<compile_context>
chip_gen: v6e
topology: v6e:2x2x1
jax: 0.10.0
libtpu: 0.0.40
codegen_flags: <defaults>
</compile_context>

<pallas_src>
import functools

import jax
import jax.numpy as jnp
from jax.experimental import pallas as pl
from jax.experimental.pallas import tpu as pltpu

IN_FEATURES = 16
OUT_FEATURES = 5
N_PAD = 128  # lane-dense padded output width


def _round_up(n: int, m: int) -> int:
    return ((n + m - 1) // m) * m


def linear_clamp_kernel(x_ref, w_ref, b_ref, o_ref):
    # x_ref: (TB, 16), w_ref: (16, 128), b_ref: (1, 128), o_ref: (TB, 128)
    y = jnp.dot(x_ref[...], w_ref[...], preferred_element_type=jnp.float32)
    y = y + b_ref[...]
    # clamp_min(0) then clamp_max(2); padded columns are 0 and stay 0.
    y = jnp.minimum(jnp.maximum(y, 0.0), 2.0)
    o_ref[...] = y.astype(o_ref.dtype)


@functools.partial(jax.jit, static_argnames=("tb",))
def linear_clamp(x, w_padded, b_padded, *, tb: int = 512):
    """x: (B, 16); w_padded: (16, 128); b_padded: (1, 128). Returns (B, 5)."""
    B = x.shape[0]
    # Tile size: multiple of 8 sublanes, capped by (rounded-up) batch size.
    TB = min(tb, _round_up(B, 8))
    Bp = _round_up(B, TB)
    if Bp != B:
        x = jnp.pad(x, ((0, Bp - B), (0, 0)))

    out_padded = pl.pallas_call(
        linear_clamp_kernel,
        out_shape=jax.ShapeDtypeStruct((Bp, N_PAD), x.dtype),
        grid_spec=pl.GridSpec(
            grid=(Bp // TB,),
            in_specs=[
                pl.BlockSpec((TB, IN_FEATURES), lambda i: (i, 0)),
                pl.BlockSpec((IN_FEATURES, N_PAD), lambda i: (0, 0)),
                pl.BlockSpec((1, N_PAD), lambda i: (0, 0)),
            ],
            out_specs=pl.BlockSpec((TB, N_PAD), lambda i: (i, 0)),
        ),
        compiler_params=pltpu.CompilerParams(
            dimension_semantics=("parallel",),
        ),
    )(x, w_padded, b_padded)

    # Drop batch padding and the lane padding (cols 5..127 are zeros).
    return out_padded[:B, :OUT_FEATURES]


def pad_params(w, b):
    """Pad (16,5) weight and (5,) bias to lane-dense (16,128) / (1,128) once."""
    w_padded = jnp.zeros((IN_FEATURES, N_PAD), dtype=w.dtype).at[:, :OUT_FEATURES].set(w)
    b_padded = jnp.zeros((1, N_PAD), dtype=b.dtype).at[0, :OUT_FEATURES].set(b)
    return w_padded, b_padded


if __name__ == "__main__":
    key = jax.random.PRNGKey(0)
    kx, kw, kb, kx2 = jax.random.split(key, 4)

    # Deterministic parameter init (nn.Linear default: U(-1/sqrt(in), 1/sqrt(in)))
    bound = 1.0 / jnp.sqrt(jnp.float32(IN_FEATURES))
    w = jax.random.uniform(
        kw, (IN_FEATURES, OUT_FEATURES), minval=-bound, maxval=bound,
        dtype=jnp.float32,
    )
    b = jax.random.uniform(
        kb, (OUT_FEATURES,), minval=-bound, maxval=bound, dtype=jnp.float32
    )
    w_padded, b_padded = pad_params(w, b)

    def reference(x):
        return jnp.clip(x @ w + b, 0.0, 2.0)

    # 1) Spec-sized input: x1 = torch.randn(1, 16)
    x1 = jax.random.normal(kx, (1, IN_FEATURES), dtype=jnp.float32)
    out1 = linear_clamp(x1, w_padded, b_padded)
    jax.block_until_ready(out1)
    assert out1.shape == (1, OUT_FEATURES)
    assert jnp.allclose(out1, reference(x1), atol=1e-5), (out1, reference(x1))

    # 2) Larger batch exercises the tiled / "parallel" grid path (grid > 1).
    x_big = jax.random.normal(kx2, (1030, IN_FEATURES), dtype=jnp.float32)
    out_big = linear_clamp(x_big, w_padded, b_padded)
    jax.block_until_ready(out_big)
    assert out_big.shape == (1030, OUT_FEATURES)
    assert jnp.allclose(out_big, reference(x_big), atol=1e-5)

    print("KERNEL_OK")
</pallas_src>

<mosaic_0001>
module attributes {stable_mosaic.version = 11 : i64} {
  func.func @linear_clamp_kernel(%arg0: i32, %arg1: memref<8x16xf32, #tpu.memory_space<vmem>>, %arg2: memref<16x128xf32, #tpu.memory_space<vmem>>, %arg3: memref<1x128xf32, #tpu.memory_space<vmem>>, %arg4: memref<8x128xf32, #tpu.memory_space<vmem>>) attributes {dimension_semantics = [#tpu.dimension_semantics<parallel>], iteration_bounds = array<i64: 1>, scalar_prefetch = 0 : i64, scratch_operands = 0 : i64, tpu.core_type = #tpu.core_type<tc>, window_params = [{transform_indices = @transform_0, window_bounds = array<i64: 8, 16>}, {pipeline_mode = #tpu.pipeline_mode<synchronous>, transform_indices = @transform_1, window_bounds = array<i64: 16, 128>}, {pipeline_mode = #tpu.pipeline_mode<synchronous>, transform_indices = @transform_2, window_bounds = array<i64: 1, 128>}, {transform_indices = @transform_3, window_bounds = array<i64: 8, 128>}]} {
    %c0 = arith.constant 0 : index
    %c0_0 = arith.constant 0 : index
    %0 = vector.load %arg1[%c0, %c0_0] : memref<8x16xf32, #tpu.memory_space<vmem>>, vector<8x16xf32>
    %c0_1 = arith.constant 0 : index
    %c0_2 = arith.constant 0 : index
    %1 = vector.load %arg2[%c0_1, %c0_2] : memref<16x128xf32, #tpu.memory_space<vmem>>, vector<16x128xf32>
    %cst = arith.constant dense<0.000000e+00> : vector<8x128xf32>
    %2 = tpu.matmul %0, %1, %cst {dimension_numbers = #tpu.dot_dimension_numbers<[1], [0], [0], [1], [0, 0, 1, 1], [], []>} : vector<8x16xf32>, vector<16x128xf32>, vector<8x128xf32> -> vector<8x128xf32>
    %c0_3 = arith.constant 0 : index
    %c0_4 = arith.constant 0 : index
    %3 = vector.load %arg3[%c0_3, %c0_4] : memref<1x128xf32, #tpu.memory_space<vmem>>, vector<1x128xf32>
    %4 = vector.broadcast %3 : vector<1x128xf32> to vector<8x128xf32>
    %5 = arith.addf %2, %4 : vector<8x128xf32>
    %cst_5 = arith.constant 0.000000e+00 : f32
    %6 = vector.broadcast %cst_5 : f32 to vector<8x128xf32>
    %7 = arith.maximumf %5, %6 : vector<8x128xf32>
    %cst_6 = arith.constant 2.000000e+00 : f32
    %8 = vector.broadcast %cst_6 : f32 to vector<8x128xf32>
    %9 = arith.minimumf %7, %8 : vector<8x128xf32>
    %c0_7 = arith.constant 0 : index
    %c0_8 = arith.constant 0 : index
    %10 = vector.load %arg4[%c0_7, %c0_8] : memref<8x128xf32, #tpu.memory_space<vmem>>, vector<8x128xf32>
    tpu.vector_store %arg4[%c0_7, %c0_8], %9 {strides = array<i32>} : memref<8x128xf32, #tpu.memory_space<vmem>>, vector<8x128xf32>,
    return
  }
  func.func @transform_0(%arg0: i32) -> (i32, i32) {
    %c0_i32 = arith.constant 0 : i32
    %c0_i32_0 = arith.constant 0 : i32
    return %arg0, %c0_i32 : i32, i32
  }
  func.func @transform_1(%arg0: i32) -> (i32, i32) {
    %c0_i32 = arith.constant 0 : i32
    %c0_i32_0 = arith.constant 0 : i32
    %c0_i32_1 = arith.constant 0 : i32
    return %c0_i32, %c0_i32_0 : i32, i32
  }
  func.func @transform_2(%arg0: i32) -> (i32, i32) {
    %c0_i32 = arith.constant 0 : i32
    %c0_i32_0 = arith.constant 0 : i32
    %c0_i32_1 = arith.constant 0 : i32
    return %c0_i32, %c0_i32_0 : i32, i32
  }
  func.func @transform_3(%arg0: i32) -> (i32, i32) {
    %c0_i32 = arith.constant 0 : i32
    %c0_i32_0 = arith.constant 0 : i32
    return %arg0, %c0_i32 : i32, i32
  }
}

</mosaic_0001>

<llo_original>
// kernel: linear_clamp.1
$region0: #{linear_clamp.1}
  #allocation0 [shape = 'u32[]', space=smem, size = 0x4, offset = 0x4, fixed_abs, tag = 'smem constant byte address 0x4 - core index']
  #allocation1 [shape = 'u32[144,128]{1,0:T(1,128)}', space=vmem, size = 0x12000, scoped, tag = 'internal scratch']
  %s0 = inlined_call_operand.vmem [shape: f32[8,16], index: 0, kind: input, shape index: {}]
  %s1 = inlined_call_operand.hbm [shape: f32[16,128], index: 1, kind: input, shape index: {}]
  %s2 = inlined_call_operand.vmem [shape: f32[1,128], index: 2, kind: input, shape index: {}]
  %s3 = inlined_call_operand.vmem [shape: f32[8,128], index: 3, kind: output, shape index: {}]
  %s4 = sld [smem:[#allocation0]]
  $region26: #{linear_clamp.1} parent=0
    _
  %s6 = ssub.s32 1, %s4
  %s7 = scalar_select 0, %s6, %s4
  $region1: #{linear_clamp.1} parent=0
    #allocation2 [shape = 'u8[8192]{0}', space=vmem, size = 0x2000, scoped, tag = 'input window, operand 1, single buffered']
    #allocation3 [shape = 's32[1]{0}', space=sflag, size = 0x4, scoped, tag = 'scoped memory for linear_clamp.1']
    %8 = vsyncpa [#allocation3], 0
    // Predicated region
    $region2: #{linear_clamp.1} parent=1 // pred_check
      _
    $region3: #{linear_clamp.1} parent=1 // pred_check_branch
      %10 = sbr.rel (0) target = $region5
    $region4: #{linear_clamp.1} parent=1 // pred_region
      _
    $region5: #{linear_clamp.1} parent=1 // pred_fallthru
      _
    // Predicated region
    $region6: #{linear_clamp.1} parent=1 // pred_check
      _
    $region7: #{linear_clamp.1} parent=1 // pred_check_branch
      %12 = sbr.rel (0) target = $region9
    $region8: #{linear_clamp.1} parent=1 // pred_region
      %s14 = ssub.s32 256, 256
      %15 = vsyncadd [#allocation3], %s14
      %s16 = sshll.u32 [#allocation2], 4
      %s17 = int_to_ptr.vmem [resolvable:$true] %s16
      %22 = dma.hbm_to_vmem [thread:$0]  %s1, 256, %s17, [#allocation3], 128, 128, 8
    $region9: #{linear_clamp.1} parent=1 // pred_fallthru
      _
    // Predicated region
    $region10: #{linear_clamp.1} parent=1 // pred_check
      _
    $region11: #{linear_clamp.1} parent=1 // pred_check_branch
      %24 = sbr.rel (0) target = $region13
    $region12: #{linear_clamp.1} parent=1 // pred_region
      _
    $region13: #{linear_clamp.1} parent=1 // pred_fallthru
      _
    // Predicated region
    $region14: #{linear_clamp.1} parent=1 // pred_check
      _
    $region15: #{linear_clamp.1} parent=1 // pred_check_branch
      %26 = sbr.rel (0) target = $region17
    $region16: #{linear_clamp.1} parent=1 // pred_region
      %27 = dma.done [#allocation3], 256
    $region17: #{linear_clamp.1} parent=1 // pred_fallthru
      _
    %v28 = vld [vmem:[%s0] sm:$0xff]
    %v29 = vld [vmem:[#allocation2] sm:$0xff]
    %v30 = vld [vmem:[#allocation2 + $0x8] sm:$0xff]
    %v31 = vld [vmem:[%s2] sm:$0x1]
    %v33 = vlaneseq
    %v34 = vshrl.u32 %v33, 7
    %v35 = vsub.s32 0, %v34
    %v36 = vrot.slane %v31, %v35
    %vm38 = vcmask 130048
    %v40 = vsel %vm38, %v28, 0
    %42 = vmatprep.subr.mxu0 0.0
    %43 = vmatpush1.msra.mxu0 0.0
    %44 = vmatprep.subr.mxu0 0.0
    %45 = vmatpush1.msra.mxu0 0.0
    %46 = vmatprep.subr.mxu0 0.0
    %47 = vmatpush1.msra.mxu0 0.0
    %48 = vmatprep.subr.mxu0 0.0
    %49 = vmatpush1.msra.mxu0 0.0
    %50 = vmatprep.subr.mxu0 0.0
    %51 = vmatpush1.msra.mxu0 0.0
    %52 = vmatprep.subr.mxu0 0.0
    %53 = vmatpush1.msra.mxu0 0.0
    %54 = vmatprep.subr.mxu0 0.0
    %55 = vmatpush1.msra.mxu0 0.0
    %56 = vmatprep.subr.mxu0 0.0
    %57 = vmatpush1.msra.mxu0 0.0
    %58 = vmatprep.subr.mxu0 0.0
    %59 = vmatpush1.msra.mxu0 0.0
    %60 = vmatprep.subr.mxu0 0.0
    %61 = vmatpush1.msra.mxu0 0.0
    %62 = vmatprep.subr.mxu0 0.0
    %63 = vmatpush1.msra.mxu0 0.0
    %64 = vmatprep.subr.mxu0 0.0
    %65 = vmatpush1.msra.mxu0 0.0
    %66 = vmatprep.subr.mxu0 0.0
    %67 = vmatpush1.msra.mxu0 0.0
    %68 = vmatprep.subr.mxu0 0.0
    %69 = vmatpush1.msra.mxu0 0.0
    %70 = vmatprep.subr.mxu0 0.0
    %71 = vmatpush1.msra.mxu0 %v30
    %72 = vmatprep.subr.mxu0 0.0
    %73 = vmatpush1.msra.mxu0 %v29
    %74 = vmatprep.subr.mxu0 0.0
    %75 = vmatpush2.msra.mxu0 0.0
    %76 = vmatprep.subr.mxu0 0.0
    %77 = vmatpush2.msra.mxu0 0.0
    %78 = vmatprep.subr.mxu0 0.0
    %79 = vmatpush2.msra.mxu0 0.0
    %80 = vmatprep.subr.mxu0 0.0
    %81 = vmatpush2.msra.mxu0 0.0
    %82 = vmatprep.subr.mxu0 0.0
    %83 = vmatpush2.msra.mxu0 0.0
    %84 = vmatprep.subr.mxu0 0.0
    %85 = vmatpush2.msra.mxu0 0.0
    %86 = vmatprep.subr.mxu0 0.0
    %87 = vmatpush2.msra.mxu0 0.0
    %88 = vmatprep.subr.mxu0 0.0
    %89 = vmatpush2.msra.mxu0 0.0
    %90 = vmatprep.subr.mxu0 0.0
    %91 = vmatpush2.msra.mxu0 0.0
    %92 = vmatprep.subr.mxu0 0.0
    %93 = vmatpush2.msra.mxu0 0.0
    %94 = vmatprep.subr.mxu0 0.0
    %95 = vmatpush2.msra.mxu0 0.0
    %96 = vmatprep.subr.mxu0 0.0
    %97 = vmatpush2.msra.mxu0 0.0
    %98 = vmatprep.subr.mxu0 0.0
    %99 = vmatpush2.msra.mxu0 0.0
    %100 = vmatprep.subr.mxu0 0.0
    %101 = vmatpush2.msra.mxu0 0.0
    %102 = vmatprep.subr.mxu0 0.0
    %103 = vmatpush2.msra.mxu0 0.0
    %104 = vmatprep.subr.mxu0 0.0
    %105 = vmatpush2.msra.mxu0 0.0
    %106 = vmatprep.mubr.f32.mxu0 0.0
    %107 = vmatmul.mubr.f32.gmra.mxu0 %v40
    %v108 = vpop.f32.mrf.mxu0
    %v109 = vadd.f32 %v36, %v108
    %v110 = vpop.f32.mrf.mxu0
    %111 = vdwg.mxu0
    %v112 = vmax.f32 %v109, 0.0
    %v113 = vmin.f32 %v112, 2.0
    %114 = vst [vmem:[%s3] sm:$0xff] %v113
    // Predicated region
    $region18: #{linear_clamp.1} parent=1 // pred_check
      _
    $region19: #{linear_clamp.1} parent=1 // pred_check_branch
      %116 = sbr.rel (0) target = $region21
    $region20: #{linear_clamp.1} parent=1 // pred_region
      _
    $region21: #{linear_clamp.1} parent=1 // pred_fallthru
      _
    // Predicated region
    $region22: #{linear_clamp.1} parent=1 // pred_check
      _
    $region23: #{linear_clamp.1} parent=1 // pred_check_branch
      %118 = sbr.rel (0) target = $region25
    $region24: #{linear_clamp.1} parent=1 // pred_region
      _
    $region25: #{linear_clamp.1} parent=1 // pred_fallthru
      _
    %119 = vsyncpa [#allocation3], 1

</llo_original>
